<compile_context>
chip_gen: v7x
topology: tpu7x:2x2x1
jax: 0.10.0
libtpu: 0.0.40
codegen_flags: <defaults>
</compile_context>

<pallas_src>
import functools
import math

import jax
import jax.numpy as jnp
from jax.experimental import pallas as pl
from jax.experimental.pallas import tpu as pltpu

EPS = 1e-6


def _gem_kernel(p_ref, x_ref, o_ref, acc_ref, *, hw, tk, ragged):
    # p_ref   : SMEM (1,) f32     -- GeM exponent.
    # x_ref   : VMEM (TM, TK)     -- input tile (any float dtype).
    # o_ref   : VMEM (TM, 1)      -- output tile (written on the last k step).
    # acc_ref : VMEM (TM, 1) f32  -- running sum over the H*W axis.
    k = pl.program_id(1)
    nk = pl.num_programs(1)

    @pl.when(k == 0)
    def _():
        acc_ref[...] = jnp.zeros_like(acc_ref)

    p = p_ref[0]
    x = jnp.maximum(x_ref[...].astype(jnp.float32), EPS)   # clamp(min=eps)

    if ragged:
        # Only emitted when HW % TK != 0: zero columns past the true H*W
        # (partial-block DMA leaves stale data there).
        col = k * tk + jax.lax.broadcasted_iota(jnp.int32, x.shape, 1)
        valid = col < hw
    else:
        valid = None

    def _accumulate(xp):
        if valid is not None:
            xp = jnp.where(valid, xp, 0.0)
        acc_ref[...] += jnp.sum(xp, axis=-1, keepdims=True)

    # x ** p: integer-p fast paths on the VPU; generic path on the EUP.
    # Exactly one branch runs per invocation (conditions are exclusive).
    is_p3 = jnp.abs(p - 3.0) < 1e-6
    is_p2 = jnp.abs(p - 2.0) < 1e-6
    generic = jnp.logical_not(jnp.logical_or(is_p3, is_p2))

    @pl.when(is_p3)
    def _():
        _accumulate(x * x * x)

    @pl.when(is_p2)
    def _():
        _accumulate(x * x)

    @pl.when(generic)
    def _():
        _accumulate(jnp.exp(p * jnp.log(x)))   # x > 0 after clamp

    @pl.when(k == nk - 1)
    def _():
        # (sum / HW) ** (1/p) == exp((log(sum) - log(HW)) / p); runs once per
        # row tile on (TM, 1) elements, so these transcendentals are negligible.
        y = jnp.exp((jnp.log(acc_ref[...]) - math.log(hw)) / p)
        o_ref[...] = y.astype(o_ref.dtype)


def _round_up(a, b):
    return (a + b - 1) // b * b


def _round_down(a, b):
    return a // b * b


def gem_pool(x, p, *, tk_max=2048, buffer_bytes=8 * 1024 * 1024):
    """GeM pooling. x: (N, C, H, W); p: (1,) GeM exponent. Returns (N, C, 1, 1)."""
    N, C, H, W = x.shape
    NC, HW = N * C, H * W

    itemsize = jnp.dtype(x.dtype).itemsize
    row_mult = max(8, 32 // itemsize)      # sublane packing: 8 f32 / 16 bf16 / 32 int8

    # Reduction tile: full H*W if it fits one lane-dense block (no mask, no 128
    # constraint), else a multiple of 128; the final partial block is clipped
    # by Pallas and masked in-kernel.  No host-side padding is materialized.
    TK = HW if HW <= tk_max else tk_max
    ragged = (HW % TK) != 0

    # Row tile: byte-budgeted (amortizes grid-step overhead), capped so the
    # "parallel" row axis keeps >= 2 blocks for the two v7x TensorCores.
    if NC <= row_mult:
        TM = NC
    else:
        tm = max(row_mult, _round_down(buffer_bytes // (TK * itemsize), row_mult))
        two_core_cap = _round_up((NC + 1) // 2, row_mult)
        if two_core_cap >= NC:             # rounding would collapse to 1 block
            two_core_cap = max(row_mult, _round_down(NC - 1, row_mult))
        TM = min(tm, two_core_cap)

    x2d = x.reshape(NC, HW)
    grid = (pl.cdiv(NC, TM), pl.cdiv(HW, TK))

    kernel = functools.partial(_gem_kernel, hw=HW, tk=TK, ragged=ragged)

    out = pl.pallas_call(
        kernel,
        out_shape=jax.ShapeDtypeStruct((NC, 1), x.dtype),
        grid=grid,
        in_specs=[
            pl.BlockSpec(memory_space=pltpu.MemorySpace.SMEM),   # p (scalar exponent)
            pl.BlockSpec((TM, TK), lambda i, k: (i, k)),         # x tile (double-buffered)
        ],
        out_specs=pl.BlockSpec((TM, 1), lambda i, k: (i, 0)),
        scratch_shapes=[pltpu.VMEM((TM, 1), jnp.float32)],
        compiler_params=pltpu.CompilerParams(
            dimension_semantics=("parallel", "arbitrary"),       # rows parallel, reduction last
            vmem_limit_bytes=48 * 1024 * 1024,                   # <= v7x 64 MiB physical
        ),
    )(p.astype(jnp.float32), x2d)

    return out.reshape(N, C, 1, 1)


def gem_ref(x, p):
    # Pure-JAX reference for the correctness check.
    xp = jnp.maximum(x.astype(jnp.float32), EPS) ** p[0]
    m = jnp.mean(xp, axis=(2, 3), keepdims=True)
    return (m ** (1.0 / p[0])).astype(x.dtype)


if __name__ == "__main__":
    key = jax.random.PRNGKey(0)
    N, C, H, W = 2, 4, 16, 16
    x = jax.random.normal(key, (N, C, H, W), dtype=jnp.float32)

    # Deterministic parameter init, as in GeM.__init__: p = ones(1) * 3.0
    p = jnp.ones((1,), dtype=jnp.float32) * 3.0

    y = jax.block_until_ready(gem_pool(x, p))
    y_ref = gem_ref(x, p)
    assert y.shape == (N, C, 1, 1), y.shape
    assert jnp.allclose(y, y_ref, rtol=2e-4, atol=1e-5), (
        float(jnp.max(jnp.abs(y - y_ref)))
    )

    # Non-integer exponent exercises the generic exp/log branch.
    p_gen = jnp.array([2.5], dtype=jnp.float32)
    y2 = jax.block_until_ready(gem_pool(x, p_gen))
    y2_ref = gem_ref(x, p_gen)
    assert jnp.allclose(y2, y2_ref, rtol=2e-4, atol=1e-5), (
        float(jnp.max(jnp.abs(y2 - y2_ref)))
    )

    print("KERNEL_OK")
</pallas_src>

<mosaic_0001>
module attributes {stable_mosaic.version = 11 : i64} {
  func.func @_gem_kernel(%arg0: i32, %arg1: i32, %arg2: memref<1xf32, #tpu.memory_space<smem>>, %arg3: memref<8x256xf32, #tpu.memory_space<vmem>>, %arg4: memref<8x1xf32, #tpu.memory_space<vmem>>, %arg5: memref<8x1xf32, #tpu.memory_space<vmem>>) attributes {dimension_semantics = [#tpu.dimension_semantics<parallel>, #tpu.dimension_semantics<arbitrary>], iteration_bounds = array<i64: 1, 1>, scalar_prefetch = 0 : i64, scratch_operands = 1 : i64, tpu.core_type = #tpu.core_type<tc>, window_params = [{transform_indices = @transform_0, window_bounds = array<i64: 1>}, {transform_indices = @transform_1, window_bounds = array<i64: 8, 256>}, {transform_indices = @transform_2, window_bounds = array<i64: 8, 1>}]} {
    %c0_i32 = arith.constant 0 : i32
    %0 = arith.cmpi eq, %arg1, %c0_i32 : i32
    %1 = arith.extui %0 : i1 to i32
    %c0_i32_0 = arith.constant 0 : i32
    %2 = arith.cmpi ne, %1, %c0_i32_0 : i32
    scf.if %2 {
      %cst_12 = arith.constant 0.000000e+00 : f32
      %24 = vector.broadcast %cst_12 : f32 to vector<8x1xf32>
      %c0_13 = arith.constant 0 : index
      %c0_14 = arith.constant 0 : index
      %25 = vector.load %arg5[%c0_13, %c0_14] : memref<8x1xf32, #tpu.memory_space<vmem>>, vector<8x1xf32>
      tpu.vector_store %arg5[%c0_13, %c0_14], %24 {strides = array<i32>} : memref<8x1xf32, #tpu.memory_space<vmem>>, vector<8x1xf32>,
    } else {
    }
    %c0 = arith.constant 0 : index
    %3 = memref.load %arg2[%c0] : memref<1xf32, #tpu.memory_space<smem>>
    %c0_1 = arith.constant 0 : index
    %c0_2 = arith.constant 0 : index
    %4 = vector.load %arg3[%c0_1, %c0_2] : memref<8x256xf32, #tpu.memory_space<vmem>>, vector<8x256xf32>
    %cst = arith.constant 9.99999997E-7 : f32
    %5 = vector.broadcast %cst : f32 to vector<8x256xf32>
    %6 = arith.maximumf %4, %5 : vector<8x256xf32>
    %cst_3 = arith.constant 3.000000e+00 : f32
    %7 = arith.subf %3, %cst_3 : f32
    %8 = math.absf %7 : f32
    %cst_4 = arith.constant 9.99999997E-7 : f32
    %9 = arith.cmpf olt, %8, %cst_4 : f32
    %cst_5 = arith.constant 2.000000e+00 : f32
    %10 = arith.subf %3, %cst_5 : f32
    %11 = math.absf %10 : f32
    %cst_6 = arith.constant 9.99999997E-7 : f32
    %12 = arith.cmpf olt, %11, %cst_6 : f32
    %13 = arith.ori %9, %12 : i1
    %true = arith.constant true
    %14 = arith.xori %13, %true : i1
    %15 = arith.extui %9 : i1 to i32
    %c0_i32_7 = arith.constant 0 : i32
    %16 = arith.cmpi ne, %15, %c0_i32_7 : i32
    scf.if %16 {
      %24 = arith.mulf %6, %6 : vector<8x256xf32>
      %25 = arith.mulf %24, %6 : vector<8x256xf32>
      %c0_12 = arith.constant 0 : index
      %c0_13 = arith.constant 0 : index
      %26 = vector.load %arg5[%c0_12, %c0_13] : memref<8x1xf32, #tpu.memory_space<vmem>>, vector<8x1xf32>
      %cst_14 = arith.constant dense<0.000000e+00> : vector<8xf32>
      %27 = vector.multi_reduction <add>, %25, %cst_14 [1] : vector<8x256xf32> to vector<8xf32>
      %28 = vector.shape_cast %27 : vector<8xf32> to vector<8x1xf32>
      %29 = arith.addf %26, %28 : vector<8x1xf32>
      %c0_15 = arith.constant 0 : index
      %c0_16 = arith.constant 0 : index
      %30 = vector.load %arg5[%c0_15, %c0_16] : memref<8x1xf32, #tpu.memory_space<vmem>>, vector<8x1xf32>
      tpu.vector_store %arg5[%c0_15, %c0_16], %29 {strides = array<i32>} : memref<8x1xf32, #tpu.memory_space<vmem>>, vector<8x1xf32>,
    } else {
    }
    %17 = arith.extui %12 : i1 to i32
    %c0_i32_8 = arith.constant 0 : i32
    %18 = arith.cmpi ne, %17, %c0_i32_8 : i32
    scf.if %18 {
      %24 = arith.mulf %6, %6 : vector<8x256xf32>
      %c0_12 = arith.constant 0 : index
      %c0_13 = arith.constant 0 : index
      %25 = vector.load %arg5[%c0_12, %c0_13] : memref<8x1xf32, #tpu.memory_space<vmem>>, vector<8x1xf32>
      %cst_14 = arith.constant dense<0.000000e+00> : vector<8xf32>
      %26 = vector.multi_reduction <add>, %24, %cst_14 [1] : vector<8x256xf32> to vector<8xf32>
      %27 = vector.shape_cast %26 : vector<8xf32> to vector<8x1xf32>
      %28 = arith.addf %25, %27 : vector<8x1xf32>
      %c0_15 = arith.constant 0 : index
      %c0_16 = arith.constant 0 : index
      %29 = vector.load %arg5[%c0_15, %c0_16] : memref<8x1xf32, #tpu.memory_space<vmem>>, vector<8x1xf32>
      tpu.vector_store %arg5[%c0_15, %c0_16], %28 {strides = array<i32>} : memref<8x1xf32, #tpu.memory_space<vmem>>, vector<8x1xf32>,
    } else {
    }
    %19 = arith.extui %14 : i1 to i32
    %c0_i32_9 = arith.constant 0 : i32
    %20 = arith.cmpi ne, %19, %c0_i32_9 : i32
    scf.if %20 {
      %24 = math.log %6 : vector<8x256xf32>
      %25 = vector.broadcast %3 : f32 to vector<8x256xf32>
      %26 = arith.mulf %25, %24 : vector<8x256xf32>
      %27 = math.exp %26 : vector<8x256xf32>
      %c0_12 = arith.constant 0 : index
      %c0_13 = arith.constant 0 : index
      %28 = vector.load %arg5[%c0_12, %c0_13] : memref<8x1xf32, #tpu.memory_space<vmem>>, vector<8x1xf32>
      %cst_14 = arith.constant dense<0.000000e+00> : vector<8xf32>
      %29 = vector.multi_reduction <add>, %27, %cst_14 [1] : vector<8x256xf32> to vector<8xf32>
      %30 = vector.shape_cast %29 : vector<8xf32> to vector<8x1xf32>
      %31 = arith.addf %28, %30 : vector<8x1xf32>
      %c0_15 = arith.constant 0 : index
      %c0_16 = arith.constant 0 : index
      %32 = vector.load %arg5[%c0_15, %c0_16] : memref<8x1xf32, #tpu.memory_space<vmem>>, vector<8x1xf32>
      tpu.vector_store %arg5[%c0_15, %c0_16], %31 {strides = array<i32>} : memref<8x1xf32, #tpu.memory_space<vmem>>, vector<8x1xf32>,
    } else {
    }
    %c0_i32_10 = arith.constant 0 : i32
    %21 = arith.cmpi eq, %arg1, %c0_i32_10 : i32
    %22 = arith.extui %21 : i1 to i32
    %c0_i32_11 = arith.constant 0 : i32
    %23 = arith.cmpi ne, %22, %c0_i32_11 : i32
    scf.if %23 {
      %c0_12 = arith.constant 0 : index
      %c0_13 = arith.constant 0 : index
      %24 = vector.load %arg5[%c0_12, %c0_13] : memref<8x1xf32, #tpu.memory_space<vmem>>, vector<8x1xf32>
      %25 = math.log %24 : vector<8x1xf32>
      %cst_14 = arith.constant 5.54517746 : f32
      %26 = vector.broadcast %cst_14 : f32 to vector<8x1xf32>
      %27 = arith.subf %25, %26 : vector<8x1xf32>
      %28 = vector.broadcast %3 : f32 to vector<8x1xf32>
      %29 = arith.divf %27, %28 : vector<8x1xf32>
      %30 = math.exp %29 : vector<8x1xf32>
      %c0_15 = arith.constant 0 : index
      %c0_16 = arith.constant 0 : index
      %31 = vector.load %arg4[%c0_15, %c0_16] : memref<8x1xf32, #tpu.memory_space<vmem>>, vector<8x1xf32>
      tpu.vector_store %arg4[%c0_15, %c0_16], %30 {strides = array<i32>} : memref<8x1xf32, #tpu.memory_space<vmem>>, vector<8x1xf32>,
    } else {
    }
    return
  }
  func.func @transform_0(%arg0: i32, %arg1: i32) -> i32 {
    %c0_i32 = arith.constant 0 : i32
    %c0_i32_0 = arith.constant 0 : i32
    return %c0_i32 : i32
  }
  func.func @transform_1(%arg0: i32, %arg1: i32) -> (i32, i32) {
    %c0_i32 = arith.constant 0 : i32
    return %arg0, %arg1 : i32, i32
  }
  func.func @transform_2(%arg0: i32, %arg1: i32) -> (i32, i32) {
    %c0_i32 = arith.constant 0 : i32
    %c0_i32_0 = arith.constant 0 : i32
    return %arg0, %c0_i32 : i32, i32
  }
}

</mosaic_0001>

<llo_original>
// kernel: tpu_custom_call.1
$region0: #{tpu_custom_call.1}
  #allocation0 [shape = 'u32[]', space=smem, size = 0x4, offset = 0x4, fixed_abs, tag = 'smem constant byte address 0x4 - core index']
  #allocation1 [shape = 'u32[144,128]{1,0:T(1,128)}', space=vmem, size = 0x12000, scoped, tag = 'internal scratch']
  #allocation2 [shape = 'f32[8,1]{1,0:T(8,128)}', space=vmem, size = 0x1000, scoped, tag = 'scratch operand']
  #allocation3 [shape = 'f32[1]{0:T(128)S(6)}', space=smem, size = 0x200, scoped, tag = 'scoped memory for tpu_custom_call.1']
  %s0 = inlined_call_operand.<no memory space> [shape: f32[1], index: 0, kind: input, shape index: {}]
  %s1 = inlined_call_operand.hbm [shape: f32[8,256], index: 1, kind: input, shape index: {}]
  %s2 = inlined_call_operand.vmem [shape: f32[8,1], index: 2, kind: output, shape index: {}]
  %s3 = sld [smem:[#allocation0]]
  $region42: #{tpu_custom_call.1} parent=0
    _
  %s5 = ssub.s32 1, %s3
  %s6 = scalar_select 0, %s5, %s3
  %7 = sst [smem:[#allocation3]] %s0
  $region1: #{tpu_custom_call.1} parent=0
    #allocation4 [shape = 'u8[8192]{0}', space=vmem, size = 0x2000, scoped, tag = 'input window, operand 1, single buffered']
    #allocation5 [shape = 's32[1]{0}', space=sflag, size = 0x4, scoped, tag = 'scoped memory for tpu_custom_call.1']
    %8 = vsyncpa [#allocation5], 0
    // Predicated region
    $region2: #{tpu_custom_call.1} parent=1 // pred_check
      _
    $region3: #{tpu_custom_call.1} parent=1 // pred_check_branch
      %10 = sbr.rel (0) target = $region5
    $region4: #{tpu_custom_call.1} parent=1 // pred_region
      _
    $region5: #{tpu_custom_call.1} parent=1 // pred_fallthru
      _
    // Predicated region
    $region6: #{tpu_custom_call.1} parent=1 // pred_check
      _
    $region7: #{tpu_custom_call.1} parent=1 // pred_check_branch
      %12 = sbr.rel (0) target = $region9
    $region8: #{tpu_custom_call.1} parent=1 // pred_region
      %s14 = ssub.s32 256, 256
      %15 = vsyncadd [#allocation5], %s14
      %s17 = sshll.u32 [#allocation4], 4
      %s18 = int_to_ptr.vmem [resolvable:$true] %s17
      %20 = dma.hbm_to_vmem [thread:$0]  %s1, 256, %s18, [#allocation5]
    $region9: #{tpu_custom_call.1} parent=1 // pred_fallthru
      _
    // Predicated region
    $region10: #{tpu_custom_call.1} parent=1 // pred_check
      _
    $region11: #{tpu_custom_call.1} parent=1 // pred_check_branch
      %22 = sbr.rel (0) target = $region13
    $region12: #{tpu_custom_call.1} parent=1 // pred_region
      %23 = dma.done [#allocation5], 256
    $region13: #{tpu_custom_call.1} parent=1 // pred_fallthru
      _
    %p24 = scmp.eq.s32.totalorder 0, 0
    // Predicated region
    $region14: #{tpu_custom_call.1} parent=1 // pred_check
      %p25 = pneg %p24
    $region15: #{tpu_custom_call.1} parent=1 // pred_check_branch
      %27 = sbr.rel (%p25) target = $region17
    $region16: #{tpu_custom_call.1} parent=1 // pred_region
      %vm28 = vcmask 7168
      %29 = vst.msk [vmem:[#allocation2] sm:$0xff] %vm28, 0.0
    $region17: #{tpu_custom_call.1} parent=1 // pred_fallthru
      _
    %s30 = sld [smem:[#allocation3]]
    %v31 = vld [vmem:[#allocation4] sm:$0xff]
    %v32 = vld [vmem:[#allocation4 + $0x8] sm:$0xff]
    %v33 = vmax.f32 %v31, 1e-06
    %v34 = vmax.f32 %v32, 1e-06
    %s35 = ssub.f32 %s30, 3.0
    %s36 = sand.u32 2147483647, %s35
    %p37 = scmp.lt.f32.partialorder %s36, 1e-06
    %s38 = ssub.f32 %s30, 2.0
    %s39 = sand.u32 2147483647, %s38
    %p40 = scmp.lt.f32.partialorder %s39, 1e-06
    %p41 = por %p37, %p40
    %p42 = pneg %p41
    // Predicated region
    $region18: #{tpu_custom_call.1} parent=1 // pred_check
      %p43 = pneg %p37
    $region19: #{tpu_custom_call.1} parent=1 // pred_check_branch
      %45 = sbr.rel (%p43) target = $region21
    $region20: #{tpu_custom_call.1} parent=1 // pred_region
      %v46 = vmul.f32 %v33, %v33
      %v47 = vmul.f32 %v34, %v34
      %v48 = vmul.f32 %v46, %v33
      %v49 = vmul.f32 %v47, %v34
      %v50 = vld [vmem:[#allocation2] sm:$0xff]
      %v51 = vadd.f32 %v48, %v49
      %52 = vadd.xlane.f32.xlu0 %v51
      %v53 = vpop.xlane.xlu0 %52
      %v54 = vadd.f32 %v50, %v53
      %vm55 = vcmask 7168
      %56 = vst.msk [vmem:[#allocation2] sm:$0xff] %vm55, %v54
    $region21: #{tpu_custom_call.1} parent=1 // pred_fallthru
      _
    // Predicated region
    $region22: #{tpu_custom_call.1} parent=1 // pred_check
      %p57 = pneg %p40
    $region23: #{tpu_custom_call.1} parent=1 // pred_check_branch
      %59 = sbr.rel (%p57) target = $region25
    $region24: #{tpu_custom_call.1} parent=1 // pred_region
      %v60 = vmul.f32 %v33, %v33
      %v61 = vmul.f32 %v34, %v34
      %v62 = vld [vmem:[#allocation2] sm:$0xff]
      %v63 = vadd.f32 %v60, %v61
      %64 = vadd.xlane.f32.xlu0 %v63
      %v65 = vpop.xlane.xlu0 %64
      %v66 = vadd.f32 %v62, %v65
      %vm67 = vcmask 7168
      %68 = vst.msk [vmem:[#allocation2] sm:$0xff] %vm67, %v66
    $region25: #{tpu_custom_call.1} parent=1 // pred_fallthru
      _
    // Predicated region
    $region26: #{tpu_custom_call.1} parent=1 // pred_check
      _
    $region27: #{tpu_custom_call.1} parent=1 // pred_check_branch
      %70 = sbr.rel (%p41) target = $region29
    $region28: #{tpu_custom_call.1} parent=1 // pred_region
      %v71 = vlog2.pop %v33
      %v72 = vmul.f32 %v71, 0.6931472
      %v73 = vlog2.pop %v34
      %v74 = vmul.f32 %v73, 0.6931472
      %v75 = vstv %s30
      %v76 = vmul.f32 %v75, %v72
      %v77 = vmul.f32 %v75, %v74
      %v78 = vmul.f32 %v76, 1.442695
      %v79 = vpow.pop %v78
      %v80 = vmul.f32 %v77, 1.442695
      %v81 = vpow.pop %v80
      %v82 = vld [vmem:[#allocation2] sm:$0xff]
      %v83 = vadd.f32 %v79, %v81
      %84 = vadd.xlane.f32.xlu0 %v83
      %v85 = vpop.xlane.xlu0 %84
      %v86 = vadd.f32 %v82, %v85
      %vm87 = vcmask 7168
      %88 = vst.msk [vmem:[#allocation2] sm:$0xff] %vm87, %v86
    $region29: #{tpu_custom_call.1} parent=1 // pred_fallthru
      _
    // Predicated region
    $region30: #{tpu_custom_call.1} parent=1 // pred_check
      %p89 = pneg %p24
    $region31: #{tpu_custom_call.1} parent=1 // pred_check_branch
      %91 = sbr.rel (%p89) target = $region33
    $region32: #{tpu_custom_call.1} parent=1 // pred_region
      %v92 = vld [vmem:[#allocation2] sm:$0xff]
      %v93 = vlog2.pop %v92
      %v94 = vmul.f32 %v93, 0.6931472
      %v95 = vsub.f32 %v94, 5.5451775
      %v96 = vstv %s30
      %v97 = vrcp.pop %v96
      %v98 = vmul.f32 %v95, %v97
      %v99 = vmul.f32 %v98, 1.442695
      %v100 = vpow.pop %v99
      %vm101 = vcmask 7168
      %102 = vst.msk [vmem:[%s2] sm:$0xff] %vm101, %v100
    $region33: #{tpu_custom_call.1} parent=1 // pred_fallthru
      _
    // Predicated region
    $region34: #{tpu_custom_call.1} parent=1 // pred_check
      _
    $region35: #{tpu_custom_call.1} parent=1 // pred_check_branch
      %104 = sbr.rel (0) target = $region37
    $region36: #{tpu_custom_call.1} parent=1 // pred_region
      _
    $region37: #{tpu_custom_call.1} parent=1 // pred_fallthru
      _
    // Predicated region
    $region38: #{tpu_custom_call.1} parent=1 // pred_check
      _
    $region39: #{tpu_custom_call.1} parent=1 // pred_check_branch
      %106 = sbr.rel (0) target = $region41
    $region40: #{tpu_custom_call.1} parent=1 // pred_region
      _
    $region41: #{tpu_custom_call.1} parent=1 // pred_fallthru
      _
    %107 = vsyncpa [#allocation5], 1

</llo_original>
